<compile_context>
chip_gen: v7x
topology: tpu7x:2x2x1
jax: 0.10.0
libtpu: 0.0.40
codegen_flags: <defaults>
</compile_context>

<pallas_src>
import jax
import jax.numpy as jnp
from jax.experimental import pallas as pl
from jax.experimental.pallas import tpu as pltpu


def _concat_kernel(spatial_ref, spectral_ref, out_ref):
    """Concatenate along the last (feature/lane) axis.

    spatial_ref : (TB, D1) VMEM tile
    spectral_ref: (TB, D2) VMEM tile
    out_ref     : (TB, D1 + D2) VMEM tile
    """
    d1 = spatial_ref.shape[1]
    # Two static-sliced vector stores. If d1 % 128 == 0 the second store is
    # lane-aligned (unmasked vst on full vregs).
    out_ref[:, :d1] = spatial_ref[...]
    out_ref[:, d1:] = spectral_ref[...]


def _choose_batch_tile(b, d1, d2, dtype, tile_rows=None):
    """Pick a batch-tile size TB that is sublane-aligned and VMEM-budgeted."""
    itemsize = jnp.dtype(dtype).itemsize
    # Sublane packing multiple: 8 for 32-bit, 16 for bf16, 32 for int8.
    sub = max(8, 32 // itemsize)

    if tile_rows is None:
        # Double-buffered (in + in + out) tiles must stay well under the
        # smallest scoped-VMEM defaults (16/32/32 MiB on v5e/v6e/v7x).
        vmem_budget = 24 * 1024 * 1024
        bytes_per_row_all_bufs = 2 * 2 * (d1 + d2) * itemsize  # 2 bufs x (in+out)
        max_rows = max(sub, vmem_budget // bytes_per_row_all_bufs)
        tb = min(b, 2048, max_rows)
    else:
        tb = min(b, int(tile_rows))

    if tb >= b:
        # Full-extent block: legal for any B (escape hatch for B < sub etc.).
        return b
    # Tiled path: second-to-last block dim must be a multiple of the sublane
    # packing (last block gets masked automatically if B % TB != 0).
    return max(sub, (tb // sub) * sub)


def mix_spatial_spectral_forward(spatial_feature, spectral_feature, *, tile_rows=None):
    """Pallas equivalent of mix_spatial_spectral.forward (torch.cat on dim 1)."""
    assert spatial_feature.ndim == 2 and spectral_feature.ndim == 2
    assert spatial_feature.shape[0] == spectral_feature.shape[0]
    assert spatial_feature.dtype == spectral_feature.dtype

    b, d1 = spatial_feature.shape
    _, d2 = spectral_feature.shape
    dtype = spatial_feature.dtype

    tb = _choose_batch_tile(b, d1, d2, dtype, tile_rows)
    grid = (pl.cdiv(b, tb),)

    out_shape = jax.ShapeDtypeStruct((b, d1 + d2), dtype)

    return pl.pallas_call(
        _concat_kernel,
        out_shape=out_shape,
        grid=grid,
        in_specs=[
            pl.BlockSpec((tb, d1), lambda i: (i, 0)),
            pl.BlockSpec((tb, d2), lambda i: (i, 0)),
        ],
        out_specs=pl.BlockSpec((tb, d1 + d2), lambda i: (i, 0)),
        compiler_params=pltpu.CompilerParams(
            # Independent output blocks per step -> shardable across the two
            # TensorCores on v7x; harmless elsewhere.
            dimension_semantics=("parallel",),
            # Don't let v5e's 16 MiB scoped default bind; tiles are budgeted
            # to ~24 MiB of double-buffered VMEM anyway (fits v7x's 64 MiB).
            vmem_limit_bytes=64 << 20,
        ),
    )(spatial_feature, spectral_feature)


def init_decoder_params(key, spatial_out_dim, spectral_out_dim, classifier_in_dim):
    """Deterministic init of the (unused-in-forward) decoder parameters:
       LayerNorm(spatial+spectral) + Linear(spatial+spectral -> classifier_in_dim)."""
    d = spatial_out_dim + spectral_out_dim
    k_w, k_b = jax.random.split(key)
    ln_gamma = jnp.ones((d,), jnp.float32)
    ln_beta = jnp.zeros((d,), jnp.float32)
    bound = 1.0 / jnp.sqrt(d)
    lin_w = jax.random.uniform(k_w, (classifier_in_dim, d), jnp.float32, -bound, bound)
    lin_b = jax.random.uniform(k_b, (classifier_in_dim,), jnp.float32, -bound, bound)
    return {"ln_gamma": ln_gamma, "ln_beta": ln_beta, "lin_w": lin_w, "lin_b": lin_b}


if __name__ == "__main__":
    # Small deterministic example shapes (feature dims kept lane-friendly:
    # spatial_out_dim is a multiple of 128 so the concat offset is lane-aligned).
    batch = 128
    spatial_out_dim = 128
    spectral_out_dim = 64
    classifier_in_dim = 32

    key = jax.random.PRNGKey(0)
    k_spa, k_spe, k_par = jax.random.split(key, 3)

    spatial_feature = jax.random.normal(k_spa, (batch, spatial_out_dim), jnp.float32)
    spectral_feature = jax.random.normal(k_spe, (batch, spectral_out_dim), jnp.float32)

    # Parameters exist on the module but forward() never uses them.
    _params = init_decoder_params(k_par, spatial_out_dim, spectral_out_dim,
                                  classifier_in_dim)

    ref = jnp.concatenate((spatial_feature, spectral_feature), axis=1)

    # 1) Default path: VMEM-budgeted tile (covers the whole small batch here).
    out = jax.block_until_ready(
        mix_spatial_spectral_forward(spatial_feature, spectral_feature))
    assert out.shape == (batch, spatial_out_dim + spectral_out_dim)
    assert out.dtype == spatial_feature.dtype
    assert bool(jnp.array_equal(out, ref))

    # 2) Explicitly tiled path: exercises the multi-step pipelined grid.
    out_tiled = jax.block_until_ready(
        mix_spatial_spectral_forward(spatial_feature, spectral_feature,
                                     tile_rows=32))
    assert bool(jnp.array_equal(out_tiled, ref))

    print("KERNEL_OK")
</pallas_src>

<mosaic_0001>
module attributes {stable_mosaic.version = 11 : i64} {
  func.func @_concat_kernel(%arg0: i32, %arg1: memref<128x128xf32, #tpu.memory_space<vmem>>, %arg2: memref<128x64xf32, #tpu.memory_space<vmem>>, %arg3: memref<128x192xf32, #tpu.memory_space<vmem>>) attributes {dimension_semantics = [#tpu.dimension_semantics<parallel>], iteration_bounds = array<i64: 1>, scalar_prefetch = 0 : i64, scratch_operands = 0 : i64, tpu.core_type = #tpu.core_type<tc>, window_params = [{transform_indices = @transform_0, window_bounds = array<i64: 128, 128>}, {transform_indices = @transform_1, window_bounds = array<i64: 128, 64>}, {transform_indices = @transform_2, window_bounds = array<i64: 128, 192>}]} {
    %c0 = arith.constant 0 : index
    %c0_0 = arith.constant 0 : index
    %0 = vector.load %arg1[%c0, %c0_0] : memref<128x128xf32, #tpu.memory_space<vmem>>, vector<128x128xf32>
    %c0_1 = arith.constant 0 : index
    %c0_2 = arith.constant 0 : index
    %1 = vector.load %arg3[%c0_1, %c0_2] : memref<128x192xf32, #tpu.memory_space<vmem>>, vector<128x128xf32>
    tpu.vector_store %arg3[%c0_1, %c0_2], %0 {strides = array<i32>} : memref<128x192xf32, #tpu.memory_space<vmem>>, vector<128x128xf32>,
    %c0_3 = arith.constant 0 : index
    %c0_4 = arith.constant 0 : index
    %2 = vector.load %arg2[%c0_3, %c0_4] : memref<128x64xf32, #tpu.memory_space<vmem>>, vector<128x64xf32>
    %c0_5 = arith.constant 0 : index
    %c128 = arith.constant 128 : index
    %3 = vector.load %arg3[%c0_5, %c128] : memref<128x192xf32, #tpu.memory_space<vmem>>, vector<128x64xf32>
    tpu.vector_store %arg3[%c0_5, %c128], %2 {strides = array<i32>} : memref<128x192xf32, #tpu.memory_space<vmem>>, vector<128x64xf32>,
    return
  }
  func.func @transform_0(%arg0: i32) -> (i32, i32) {
    %c0_i32 = arith.constant 0 : i32
    %c0_i32_0 = arith.constant 0 : i32
    return %arg0, %c0_i32 : i32, i32
  }
  func.func @transform_1(%arg0: i32) -> (i32, i32) {
    %c0_i32 = arith.constant 0 : i32
    %c0_i32_0 = arith.constant 0 : i32
    return %arg0, %c0_i32 : i32, i32
  }
  func.func @transform_2(%arg0: i32) -> (i32, i32) {
    %c0_i32 = arith.constant 0 : i32
    %c0_i32_0 = arith.constant 0 : i32
    return %arg0, %c0_i32 : i32, i32
  }
}

</mosaic_0001>

<llo_original>
// kernel: tpu_custom_call.1
$region0: #{tpu_custom_call.1}
  #allocation0 [shape = 'u32[]', space=smem, size = 0x4, offset = 0x4, fixed_abs, tag = 'smem constant byte address 0x4 - core index']
  #allocation1 [shape = 'u32[144,128]{1,0:T(1,128)}', space=vmem, size = 0x12000, scoped, tag = 'internal scratch']
  %s0 = inlined_call_operand.hbm [shape: f32[128,128], index: 0, kind: input, shape index: {}]
  %s1 = inlined_call_operand.hbm [shape: f32[128,64], index: 1, kind: input, shape index: {}]
  %s2 = inlined_call_operand.hbm [shape: f32[128,192], index: 2, kind: output, shape index: {}]
  %s3 = sld [smem:[#allocation0]]
  $region26: #{tpu_custom_call.1} parent=0
    _
  %s5 = ssub.s32 1, %s3
  %s6 = scalar_select 0, %s5, %s3
  $region1: #{tpu_custom_call.1} parent=0
    #allocation2 [shape = 'u8[65536]{0}', space=vmem, size = 0x10000, scoped, tag = 'input window, operand 0, single buffered']
    #allocation3 [shape = 's32[1]{0}', space=sflag, size = 0x4, scoped, tag = 'scoped memory for tpu_custom_call.1']
    #allocation4 [shape = 's32[1]{0}', space=sflag, size = 0x4, scoped, tag = 'scoped memory for tpu_custom_call.1']
    #allocation5 [shape = 'u8[65536]{0}', space=vmem, size = 0x10000, scoped, tag = 'input window, operand 1, single buffered']
    #allocation6 [shape = 's32[1]{0}', space=sflag, size = 0x4, scoped, tag = 'scoped memory for tpu_custom_call.1']
    #allocation7 [shape = 'u8[131072]{0}', space=vmem, size = 0x20000, scoped, tag = 'output window, operand 0, single buffered']
    %7 = vsyncpa [#allocation3], 0
    %8 = vsyncpa [#allocation6], 0
    %9 = vsyncpa [#allocation4], 0
    // Predicated region
    $region2: #{tpu_custom_call.1} parent=1 // pred_check
      _
    $region3: #{tpu_custom_call.1} parent=1 // pred_check_branch
      %11 = sbr.rel (0) target = $region5
    $region4: #{tpu_custom_call.1} parent=1 // pred_region
      %s13 = ssub.s32 2048, 2048
      %14 = vsyncadd [#allocation3], %s13
      %s15 = sshll.u32 [#allocation2], 4
      %s16 = int_to_ptr.vmem [resolvable:$true] %s15
      %21 = dma.hbm_to_vmem [thread:$0]  %s0, 2048, %s16, [#allocation3], 128, 128, 8
    $region5: #{tpu_custom_call.1} parent=1 // pred_fallthru
      _
    // Predicated region
    $region6: #{tpu_custom_call.1} parent=1 // pred_check
      _
    $region7: #{tpu_custom_call.1} parent=1 // pred_check_branch
      %23 = sbr.rel (0) target = $region9
    $region8: #{tpu_custom_call.1} parent=1 // pred_region
      %s25 = ssub.s32 2048, 2048
      %26 = vsyncadd [#allocation6], %s25
      %s27 = sshll.u32 [#allocation5], 4
      %s28 = int_to_ptr.vmem [resolvable:$true] %s27
      %33 = dma.hbm_to_vmem [thread:$0]  %s1, 2048, %s28, [#allocation6], 128, 128, 8
    $region9: #{tpu_custom_call.1} parent=1 // pred_fallthru
      _
    // Predicated region
    $region10: #{tpu_custom_call.1} parent=1 // pred_check
      _
    $region11: #{tpu_custom_call.1} parent=1 // pred_check_branch
      %35 = sbr.rel (0) target = $region13
    $region12: #{tpu_custom_call.1} parent=1 // pred_region
      %36 = dma.done [#allocation3], 2048
    $region13: #{tpu_custom_call.1} parent=1 // pred_fallthru
      _
    // Predicated region
    $region14: #{tpu_custom_call.1} parent=1 // pred_check
      _
    $region15: #{tpu_custom_call.1} parent=1 // pred_check_branch
      %38 = sbr.rel (0) target = $region17
    $region16: #{tpu_custom_call.1} parent=1 // pred_region
      %39 = dma.done [#allocation6], 2048
    $region17: #{tpu_custom_call.1} parent=1 // pred_fallthru
      _
    %v40 = vld [vmem:[#allocation2] sm:$0xff]
    %v41 = vld [vmem:[#allocation2 + $0x8] sm:$0xff]
    %v42 = vld [vmem:[#allocation2 + $0x10] sm:$0xff]
    %v43 = vld [vmem:[#allocation2 + $0x18] sm:$0xff]
    %v44 = vld [vmem:[#allocation2 + $0x20] sm:$0xff]
    %v45 = vld [vmem:[#allocation2 + $0x28] sm:$0xff]
    %v46 = vld [vmem:[#allocation2 + $0x30] sm:$0xff]
    %v47 = vld [vmem:[#allocation2 + $0x38] sm:$0xff]
    %v48 = vld [vmem:[#allocation2 + $0x40] sm:$0xff]
    %v49 = vld [vmem:[#allocation2 + $0x48] sm:$0xff]
    %v50 = vld [vmem:[#allocation2 + $0x50] sm:$0xff]
    %v51 = vld [vmem:[#allocation2 + $0x58] sm:$0xff]
    %v52 = vld [vmem:[#allocation2 + $0x60] sm:$0xff]
    %v53 = vld [vmem:[#allocation2 + $0x68] sm:$0xff]
    %v54 = vld [vmem:[#allocation2 + $0x70] sm:$0xff]
    %v55 = vld [vmem:[#allocation2 + $0x78] sm:$0xff]
    %56 = vst [vmem:[#allocation7] sm:$0xff] %v40
    %57 = vst [vmem:[#allocation7 + $0x10] sm:$0xff] %v41
    %58 = vst [vmem:[#allocation7 + $0x20] sm:$0xff] %v42
    %59 = vst [vmem:[#allocation7 + $0x30] sm:$0xff] %v43
    %60 = vst [vmem:[#allocation7 + $0x40] sm:$0xff] %v44
    %61 = vst [vmem:[#allocation7 + $0x50] sm:$0xff] %v45
    %62 = vst [vmem:[#allocation7 + $0x60] sm:$0xff] %v46
    %63 = vst [vmem:[#allocation7 + $0x70] sm:$0xff] %v47
    %64 = vst [vmem:[#allocation7 + $0x80] sm:$0xff] %v48
    %65 = vst [vmem:[#allocation7 + $0x90] sm:$0xff] %v49
    %66 = vst [vmem:[#allocation7 + $0xa0] sm:$0xff] %v50
    %67 = vst [vmem:[#allocation7 + $0xb0] sm:$0xff] %v51
    %68 = vst [vmem:[#allocation7 + $0xc0] sm:$0xff] %v52
    %69 = vst [vmem:[#allocation7 + $0xd0] sm:$0xff] %v53
    %70 = vst [vmem:[#allocation7 + $0xe0] sm:$0xff] %v54
    %71 = vst [vmem:[#allocation7 + $0xf0] sm:$0xff] %v55
    %v72 = vld [vmem:[#allocation5] sm:$0xff]
    %v73 = vld [vmem:[#allocation5 + $0x8] sm:$0xff]
    %v74 = vld [vmem:[#allocation5 + $0x10] sm:$0xff]
    %v75 = vld [vmem:[#allocation5 + $0x18] sm:$0xff]
    %v76 = vld [vmem:[#allocation5 + $0x20] sm:$0xff]
    %v77 = vld [vmem:[#allocation5 + $0x28] sm:$0xff]
    %v78 = vld [vmem:[#allocation5 + $0x30] sm:$0xff]
    %v79 = vld [vmem:[#allocation5 + $0x38] sm:$0xff]
    %v80 = vld [vmem:[#allocation5 + $0x40] sm:$0xff]
    %v81 = vld [vmem:[#allocation5 + $0x48] sm:$0xff]
    %v82 = vld [vmem:[#allocation5 + $0x50] sm:$0xff]
    %v83 = vld [vmem:[#allocation5 + $0x58] sm:$0xff]
    %v84 = vld [vmem:[#allocation5 + $0x60] sm:$0xff]
    %v85 = vld [vmem:[#allocation5 + $0x68] sm:$0xff]
    %v86 = vld [vmem:[#allocation5 + $0x70] sm:$0xff]
    %v87 = vld [vmem:[#allocation5 + $0x78] sm:$0xff]
    %vm88 = vcmask 523264
    %89 = vst.msk [vmem:[#allocation7 + $0x8] sm:$0xff] %vm88, %v72
    %90 = vst.msk [vmem:[#allocation7 + $0x18] sm:$0xff] %vm88, %v73
    %91 = vst.msk [vmem:[#allocation7 + $0x28] sm:$0xff] %vm88, %v74
    %92 = vst.msk [vmem:[#allocation7 + $0x38] sm:$0xff] %vm88, %v75
    %93 = vst.msk [vmem:[#allocation7 + $0x48] sm:$0xff] %vm88, %v76
    %94 = vst.msk [vmem:[#allocation7 + $0x58] sm:$0xff] %vm88, %v77
    %95 = vst.msk [vmem:[#allocation7 + $0x68] sm:$0xff] %vm88, %v78
    %96 = vst.msk [vmem:[#allocation7 + $0x78] sm:$0xff] %vm88, %v79
    %97 = vst.msk [vmem:[#allocation7 + $0x88] sm:$0xff] %vm88, %v80
    %98 = vst.msk [vmem:[#allocation7 + $0x98] sm:$0xff] %vm88, %v81
    %99 = vst.msk [vmem:[#allocation7 + $0xa8] sm:$0xff] %vm88, %v82
    %100 = vst.msk [vmem:[#allocation7 + $0xb8] sm:$0xff] %vm88, %v83
    %101 = vst.msk [vmem:[#allocation7 + $0xc8] sm:$0xff] %vm88, %v84
    %102 = vst.msk [vmem:[#allocation7 + $0xd8] sm:$0xff] %vm88, %v85
    %103 = vst.msk [vmem:[#allocation7 + $0xe8] sm:$0xff] %vm88, %v86
    %104 = vst.msk [vmem:[#allocation7 + $0xf8] sm:$0xff] %vm88, %v87
    // Predicated region
    $region18: #{tpu_custom_call.1} parent=1 // pred_check
      _
    $region19: #{tpu_custom_call.1} parent=1 // pred_check_branch
      %106 = sbr.rel (0) target = $region21
    $region20: #{tpu_custom_call.1} parent=1 // pred_region
      %s108 = ssub.s32 4096, 4096
      %109 = vsyncadd [#allocation4], %s108
      %s110 = sshll.u32 [#allocation7], 4
      %s111 = int_to_ptr.vmem [resolvable:$true] %s110
      %116 = dma.vmem_to_hbm [thread:$0]  %s111, 4096, %s2, [#allocation4], 256, 256, 16
    $region21: #{tpu_custom_call.1} parent=1 // pred_fallthru
      _
    // Predicated region
    $region22: #{tpu_custom_call.1} parent=1 // pred_check
      _
    $region23: #{tpu_custom_call.1} parent=1 // pred_check_branch
      %118 = sbr.rel (0) target = $region25
    $region24: #{tpu_custom_call.1} parent=1 // pred_region
      %119 = dma.done [#allocation4], 4096
    $region25: #{tpu_custom_call.1} parent=1 // pred_fallthru
      _
    %120 = vsyncpa [#allocation3], 1
    %121 = vsyncpa [#allocation6], 1
    %122 = vsyncpa [#allocation4], 1

</llo_original>
